<compile_context>
chip_gen: v6e
topology: v6e:2x2x1
jax: 0.10.0
libtpu: 0.0.40
codegen_flags: <defaults>
</compile_context>

<pallas_src>
import math

import jax
import jax.numpy as jnp
from jax.experimental import pallas as pl
from jax.experimental.pallas import tpu as pltpu


_HALF_LOG_2PI = 0.9189385332046727  # 0.5 * log(2*pi)
# Padding value for log_scale so a zero-padded parameter (value 0, loc 0)
# contributes exactly 0 to the summed log-prior:
#   lp_pad = -0.5*0 - ls_pad - 0.5*log(2*pi) = 0   when ls_pad = -0.5*log(2*pi)
_LS_PAD = -_HALF_LOG_2PI


def _round_up(x, m):
    return ((x + m - 1) // m) * m


def _choose_tile(size, max_tile, align):
    """Adaptive tile: smallest aligned tile so that padding waste stays under
    one `align` group (e.g. B=300, max 256 -> tile 152, padded 304)."""
    size_aligned = _round_up(max(size, 1), align)
    n_tiles = max(1, math.ceil(size_aligned / max_tile))
    tile = _round_up(math.ceil(size_aligned / n_tiles), align)
    padded = tile * math.ceil(size_aligned / tile)
    return tile, padded


def _pad2(a, rows, cols, value=0.0):
    return jnp.pad(a, ((0, rows - a.shape[0]), (0, cols - a.shape[1])),
                   constant_values=value)


# ---------------------------------------------------------------------------
# Kernel 1: tiled y = x @ W^T + b  (W pre-transposed to [K, N], bf16 -> MXU)
# ---------------------------------------------------------------------------
def _linear_kernel_f32out(x_ref, wt_ref, b_ref, y_ref):
    """f32 output: accumulate the K reduction directly into the resident
    output block (no separate VMEM accumulator, no epilogue copy)."""
    k = pl.program_id(2)

    @pl.when(k == 0)
    def _():
        y_ref[...] = jnp.zeros_like(y_ref)

    y_ref[...] += jnp.dot(x_ref[...], wt_ref[...],
                          preferred_element_type=jnp.float32)

    @pl.when(k == pl.num_programs(2) - 1)
    def _():
        y_ref[...] += b_ref[...]


def _linear_kernel_castout(x_ref, wt_ref, b_ref, y_ref, acc_ref):
    """Non-f32 output (e.g. bf16 activations): f32 VMEM accumulator, single
    cast at the final store."""
    k = pl.program_id(2)

    @pl.when(k == 0)
    def _():
        acc_ref[...] = jnp.zeros_like(acc_ref)

    acc_ref[...] += jnp.dot(x_ref[...], wt_ref[...],
                            preferred_element_type=jnp.float32)

    @pl.when(k == pl.num_programs(2) - 1)
    def _():
        y_ref[...] = (acc_ref[...] + b_ref[...]).astype(y_ref.dtype)


# ---------------------------------------------------------------------------
# Kernel 2: log-prior over (W, b), decoupled from the GEMM.
# Reads every W-sized array exactly once; memory-bound, serial grid is fine.
# ---------------------------------------------------------------------------
def _prior_kernel(w_ref, loc_w_ref, ls_w_ref, b_ref, loc_b_ref, ls_b_ref,
                  lp_ref):
    r = pl.program_id(0)
    c = pl.program_id(1)

    @pl.when((r == 0) & (c == 0))
    def _():
        # Initialize with the (tiny) bias contribution so it is counted once.
        lsb = ls_b_ref[...]
        zb = (b_ref[...] - loc_b_ref[...]) * jnp.exp(-lsb)
        lp_ref[...] = jnp.sum(-0.5 * zb * zb - lsb - _HALF_LOG_2PI,
                              keepdims=True)

    ls = ls_w_ref[...]
    z = (w_ref[...] - loc_w_ref[...]) * jnp.exp(-ls)      # exp on EUP
    lp_ref[...] += jnp.sum(-0.5 * z * z - ls - _HALF_LOG_2PI, keepdims=True)


# ---------------------------------------------------------------------------
# One-time layout plumbing (per optimizer step, NOT per forward).
# ---------------------------------------------------------------------------
def prepare_params(w, b, prior_loc, prior_log_scale, *,
                   compute_dtype=jnp.bfloat16,
                   tn_max=1024, tk_max=1024,      # GEMM tiles (bf16)
                   tr_max=256, tc_max=512):       # prior tiles (f32)
    """Pre-transpose/pad/cast W for the GEMM and reshape/pad the prior
    operands (native W layout — no transpose of loc/log_scale needed).
    Cache the result; it only changes when the parameters change."""
    out_f, in_f = w.shape
    p_w = out_f * in_f

    # ---- GEMM operands: W^T in the MXU compute dtype -----------------------
    tk, k_pad = _choose_tile(in_f, tk_max, 128)
    tn, n_pad = _choose_tile(out_f, tn_max, 128)
    wt_p = _pad2(w.T.astype(compute_dtype), k_pad, n_pad)        # [k_pad, n_pad]
    bias_row = _pad2(b.astype(jnp.float32).reshape(1, out_f), 1, n_pad)

    # ---- prior operands: native (out_f, in_f) layout, f32 for exactness ----
    tr, r_pad = _choose_tile(out_f, tr_max, 8)
    tc, c_pad = _choose_tile(in_f, tc_max, 128)
    cb_pad = _round_up(out_f, 128)

    f32 = jnp.float32
    prior_w = _pad2(w.astype(f32), r_pad, c_pad)
    prior_loc_w = _pad2(prior_loc[:p_w].reshape(out_f, in_f).astype(f32),
                        r_pad, c_pad)
    prior_ls_w = _pad2(prior_log_scale[:p_w].reshape(out_f, in_f).astype(f32),
                       r_pad, c_pad, value=_LS_PAD)
    prior_b = _pad2(b.astype(f32).reshape(1, out_f), 1, cb_pad)
    prior_loc_b = _pad2(prior_loc[p_w:].reshape(1, out_f).astype(f32),
                        1, cb_pad)
    prior_ls_b = _pad2(prior_log_scale[p_w:].reshape(1, out_f).astype(f32),
                       1, cb_pad, value=_LS_PAD)

    return dict(
        in_features=in_f, out_features=out_f, compute_dtype=compute_dtype,
        wt=wt_p, bias_row=bias_row, tk=tk, k_pad=k_pad, tn=tn, n_pad=n_pad,
        prior_w=prior_w, prior_loc_w=prior_loc_w, prior_ls_w=prior_ls_w,
        prior_b=prior_b, prior_loc_b=prior_loc_b, prior_ls_b=prior_ls_b,
        tr=tr, r_pad=r_pad, tc=tc, c_pad=c_pad,
    )


# ---------------------------------------------------------------------------
# Log-prior: its own small pallas_call (decoupled from the GEMM).
# ---------------------------------------------------------------------------
def _log_prior(params, *, vmem_limit_bytes=32 * 1024 * 1024):
    tr, r_pad = params["tr"], params["r_pad"]
    tc, c_pad = params["tc"], params["c_pad"]
    grid = (r_pad // tr, c_pad // tc)

    n_w = r_pad * c_pad
    n_b = params["prior_b"].size
    cost = pl.CostEstimate(
        flops=8 * (n_w + n_b),
        transcendentals=n_w + n_b,                       # exp(-log_scale)
        bytes_accessed=4 * (3 * n_w) + 4 * (3 * n_b) * grid[0] * grid[1] + 4,
    )

    w_spec = pl.BlockSpec((tr, tc), lambda r, c: (r, c))
    row_spec = pl.BlockSpec(params["prior_b"].shape, lambda r, c: (0, 0))

    lp = pl.pallas_call(
        _prior_kernel,
        out_shape=jax.ShapeDtypeStruct((1, 1), jnp.float32),
        grid_spec=pltpu.PrefetchScalarGridSpec(
            num_scalar_prefetch=0,
            grid=grid,
            in_specs=[w_spec, w_spec, w_spec, row_spec, row_spec, row_spec],
            out_specs=pl.BlockSpec((1, 1), lambda r, c: (0, 0)),
        ),
        compiler_params=pltpu.CompilerParams(
            # The scalar accumulator is resident across the whole grid, so
            # this (small, memory-bound) kernel stays sequential.
            dimension_semantics=("arbitrary", "arbitrary"),
            vmem_limit_bytes=vmem_limit_bytes,
        ),
        cost_estimate=cost,
    )(params["prior_w"], params["prior_loc_w"], params["prior_ls_w"],
      params["prior_b"], params["prior_loc_b"], params["prior_ls_b"])
    return lp[0, 0]


# ---------------------------------------------------------------------------
# Wrapper: PriorModule(nn.Linear).forward
# ---------------------------------------------------------------------------
def prior_module_forward(x, params, *, return_log_prior=False, tm_max=256,
                         vmem_limit_bytes=32 * 1024 * 1024):
    """x: [B, in_features]; params: output of prepare_params."""
    B, in_f = x.shape
    assert in_f == params["in_features"]
    out_f = params["out_features"]
    tk, k_pad = params["tk"], params["k_pad"]
    tn, n_pad = params["tn"], params["n_pad"]
    compute_dtype = params["compute_dtype"]
    out_dtype = x.dtype                     # emit y in the activation dtype

    # Adaptive M tile: keep M padding waste under one sublane group.
    tm, m_pad = _choose_tile(B, tm_max, 8)

    x_p = _pad2(x.astype(compute_dtype), m_pad, k_pad)

    grid = (m_pad // tm, n_pad // tn, k_pad // tk)
    ni, nj, _ = grid

    itemsize_in = jnp.dtype(compute_dtype).itemsize
    cost = pl.CostEstimate(
        flops=2 * m_pad * k_pad * n_pad,
        transcendentals=0,
        bytes_accessed=(m_pad * k_pad * itemsize_in * nj        # x streamed n_j times
                        + k_pad * n_pad * itemsize_in * ni      # W streamed n_i times
                        + n_pad * 4 * ni
                        + m_pad * n_pad * jnp.dtype(out_dtype).itemsize),
    )

    if out_dtype == jnp.float32:
        kernel = _linear_kernel_f32out
        scratch = []
    else:
        kernel = _linear_kernel_castout
        scratch = [pltpu.VMEM((tm, tn), jnp.float32)]

    y_pad = pl.pallas_call(
        kernel,
        out_shape=jax.ShapeDtypeStruct((m_pad, n_pad), out_dtype),
        grid_spec=pltpu.PrefetchScalarGridSpec(
            num_scalar_prefetch=0,
            grid=grid,
            in_specs=[
                pl.BlockSpec((tm, tk), lambda i, j, k: (i, k)),   # x   (bf16)
                pl.BlockSpec((tk, tn), lambda i, j, k: (k, j)),   # W^T (bf16)
                pl.BlockSpec((1, tn), lambda i, j, k: (0, j)),    # bias (f32)
            ],
            out_specs=pl.BlockSpec((tm, tn), lambda i, j, k: (i, j)),
            scratch_shapes=scratch,
        ),
        compiler_params=pltpu.CompilerParams(
            # Output/accumulator is only resident across K -> K stays
            # "arbitrary"; M/N tiles are independent and split across the two
            # v7x TensorCores.
            dimension_semantics=("parallel", "parallel", "arbitrary"),
            vmem_limit_bytes=vmem_limit_bytes,
        ),
        cost_estimate=cost,
    )(x_p, params["wt"], params["bias_row"])

    output = y_pad[:B, :out_f]
    if not return_log_prior:
        return output                 # prior arrays are never touched
    return output, _log_prior(params)


if __name__ == "__main__":
    # Shapes from the class docstring example.
    batch_size = 10
    in_features = 4
    out_features = 2
    num_parameters = out_features * in_features + out_features  # 10

    key = jax.random.PRNGKey(0)
    k_x, k_w, k_b = jax.random.split(key, 3)

    w = jax.random.normal(k_w, (out_features, in_features), dtype=jnp.float32) * 0.1
    b = jax.random.normal(k_b, (out_features,), dtype=jnp.float32) * 0.1
    prior_loc = jnp.zeros((num_parameters,), dtype=jnp.float32)
    prior_log_scale = jnp.full((num_parameters,), -1.0, dtype=jnp.float32)
    x = jax.random.uniform(k_x, (batch_size, in_features), dtype=jnp.float32)

    # Layout plumbing hoisted out of the hot path (do this once per optimizer
    # step, e.g. under jax.jit, and reuse for every forward).
    params = prepare_params(w, b, prior_loc, prior_log_scale)

    output, lp = prior_module_forward(x, params, return_log_prior=True)
    output = jax.block_until_ready(output)
    lp = jax.block_until_ready(lp)

    # Pure-JAX references.
    ref_out_f32 = x @ w.T + b[None, :]
    ref_out_bf16 = jnp.dot(x.astype(jnp.bfloat16), w.T.astype(jnp.bfloat16),
                           preferred_element_type=jnp.float32) + b[None, :]
    particle = jnp.concatenate([w.reshape(-1), b.reshape(-1)])
    scale = jnp.exp(prior_log_scale)
    ref_lp = jnp.sum(
        -0.5 * ((particle - prior_loc) / scale) ** 2
        - prior_log_scale
        - 0.5 * jnp.log(2.0 * jnp.pi)
    )

    assert output.shape == (batch_size, out_features)
    assert output.dtype == x.dtype
    assert lp.shape == ()
    assert jnp.allclose(output, ref_out_bf16, atol=1e-4), \
        "linear output mismatch (vs bf16-MXU reference)"
    assert jnp.allclose(output, ref_out_f32, atol=2e-2, rtol=2e-2), \
        "linear output mismatch (vs f32 reference)"
    assert jnp.allclose(lp, ref_lp, atol=1e-4), "log prior mismatch"

    # Linear-only path (return_log_prior=False) skips the prior kernel.
    out_only = jax.block_until_ready(prior_module_forward(x, params))
    assert jnp.allclose(out_only, output), "return_log_prior=False path mismatch"

    print("KERNEL_OK")
</pallas_src>

<mosaic_0001>
module attributes {stable_mosaic.version = 11 : i64} {
  func.func @_linear_kernel_f32out(%arg0: i32, %arg1: i32, %arg2: i32, %arg3: memref<16x128xbf16, #tpu.memory_space<vmem>>, %arg4: memref<128x128xbf16, #tpu.memory_space<vmem>>, %arg5: memref<1x128xf32, #tpu.memory_space<vmem>>, %arg6: memref<16x128xf32, #tpu.memory_space<vmem>>) attributes {dimension_semantics = [#tpu.dimension_semantics<parallel>, #tpu.dimension_semantics<parallel>, #tpu.dimension_semantics<arbitrary>], iteration_bounds = array<i64: 1, 1, 1>, scalar_prefetch = 0 : i64, scratch_operands = 0 : i64, tpu.core_type = #tpu.core_type<tc>, window_params = [{transform_indices = @transform_0, window_bounds = array<i64: 16, 128>}, {transform_indices = @transform_1, window_bounds = array<i64: 128, 128>}, {transform_indices = @transform_2, window_bounds = array<i64: 1, 128>}, {transform_indices = @transform_3, window_bounds = array<i64: 16, 128>}]} {
    %c0_i32 = arith.constant 0 : i32
    %0 = arith.cmpi eq, %arg2, %c0_i32 : i32
    %1 = arith.extui %0 : i1 to i32
    %c0_i32_0 = arith.constant 0 : i32
    %2 = arith.cmpi ne, %1, %c0_i32_0 : i32
    scf.if %2 {
      %cst_10 = arith.constant 0.000000e+00 : f32
      %12 = vector.broadcast %cst_10 : f32 to vector<16x128xf32>
      %c0_11 = arith.constant 0 : index
      %c0_12 = arith.constant 0 : index
      %13 = vector.load %arg6[%c0_11, %c0_12] : memref<16x128xf32, #tpu.memory_space<vmem>>, vector<16x128xf32>
      tpu.vector_store %arg6[%c0_11, %c0_12], %12 {strides = array<i32>} : memref<16x128xf32, #tpu.memory_space<vmem>>, vector<16x128xf32>,
    } else {
    }
    %c0 = arith.constant 0 : index
    %c0_1 = arith.constant 0 : index
    %3 = vector.load %arg6[%c0, %c0_1] : memref<16x128xf32, #tpu.memory_space<vmem>>, vector<16x128xf32>
    %c0_2 = arith.constant 0 : index
    %c0_3 = arith.constant 0 : index
    %4 = vector.load %arg3[%c0_2, %c0_3] : memref<16x128xbf16, #tpu.memory_space<vmem>>, vector<16x128xbf16>
    %c0_4 = arith.constant 0 : index
    %c0_5 = arith.constant 0 : index
    %5 = vector.load %arg4[%c0_4, %c0_5] : memref<128x128xbf16, #tpu.memory_space<vmem>>, vector<128x128xbf16>
    %cst = arith.constant dense<0.000000e+00> : vector<16x128xf32>
    %6 = tpu.matmul %4, %5, %cst {dimension_numbers = #tpu.dot_dimension_numbers<[1], [0], [0], [1], [0, 0, 1, 1], [], []>} : vector<16x128xbf16>, vector<128x128xbf16>, vector<16x128xf32> -> vector<16x128xf32>
    %7 = arith.addf %3, %6 : vector<16x128xf32>
    %c0_6 = arith.constant 0 : index
    %c0_7 = arith.constant 0 : index
    %8 = vector.load %arg6[%c0_6, %c0_7] : memref<16x128xf32, #tpu.memory_space<vmem>>, vector<16x128xf32>
    tpu.vector_store %arg6[%c0_6, %c0_7], %7 {strides = array<i32>} : memref<16x128xf32, #tpu.memory_space<vmem>>, vector<16x128xf32>,
    %c0_i32_8 = arith.constant 0 : i32
    %9 = arith.cmpi eq, %arg2, %c0_i32_8 : i32
    %10 = arith.extui %9 : i1 to i32
    %c0_i32_9 = arith.constant 0 : i32
    %11 = arith.cmpi ne, %10, %c0_i32_9 : i32
    scf.if %11 {
      %c0_10 = arith.constant 0 : index
      %c0_11 = arith.constant 0 : index
      %12 = vector.load %arg6[%c0_10, %c0_11] : memref<16x128xf32, #tpu.memory_space<vmem>>, vector<16x128xf32>
      %c0_12 = arith.constant 0 : index
      %c0_13 = arith.constant 0 : index
      %13 = vector.load %arg5[%c0_12, %c0_13] : memref<1x128xf32, #tpu.memory_space<vmem>>, vector<1x128xf32>
      %14 = vector.broadcast %13 : vector<1x128xf32> to vector<16x128xf32>
      %15 = arith.addf %12, %14 : vector<16x128xf32>
      %c0_14 = arith.constant 0 : index
      %c0_15 = arith.constant 0 : index
      %16 = vector.load %arg6[%c0_14, %c0_15] : memref<16x128xf32, #tpu.memory_space<vmem>>, vector<16x128xf32>
      tpu.vector_store %arg6[%c0_14, %c0_15], %15 {strides = array<i32>} : memref<16x128xf32, #tpu.memory_space<vmem>>, vector<16x128xf32>,
    } else {
    }
    return
  }
  func.func @transform_0(%arg0: i32, %arg1: i32, %arg2: i32) -> (i32, i32) {
    %c0_i32 = arith.constant 0 : i32
    return %arg0, %arg2 : i32, i32
  }
  func.func @transform_1(%arg0: i32, %arg1: i32, %arg2: i32) -> (i32, i32) {
    %c0_i32 = arith.constant 0 : i32
    return %arg2, %arg1 : i32, i32
  }
  func.func @transform_2(%arg0: i32, %arg1: i32, %arg2: i32) -> (i32, i32) {
    %c0_i32 = arith.constant 0 : i32
    %c0_i32_0 = arith.constant 0 : i32
    return %c0_i32, %arg1 : i32, i32
  }
  func.func @transform_3(%arg0: i32, %arg1: i32, %arg2: i32) -> (i32, i32) {
    %c0_i32 = arith.constant 0 : i32
    return %arg0, %arg1 : i32, i32
  }
}

</mosaic_0001>

<llo_original>
// kernel: tpu_custom_call.1
$region0: #{tpu_custom_call.1}
  #allocation0 [shape = 'u32[]', space=smem, size = 0x4, offset = 0x4, fixed_abs, tag = 'smem constant byte address 0x4 - core index']
  #allocation1 [shape = 'u32[144,128]{1,0:T(1,128)}', space=vmem, size = 0x12000, scoped, tag = 'internal scratch']
  %s0 = inlined_call_operand.hbm [shape: bf16[16,128], index: 0, kind: input, shape index: {}]
  %s1 = inlined_call_operand.hbm [shape: bf16[128,128], index: 1, kind: input, shape index: {}]
  %s2 = inlined_call_operand.vmem [shape: f32[1,128], index: 2, kind: input, shape index: {}]
  %s3 = inlined_call_operand.hbm [shape: f32[16,128], index: 3, kind: output, shape index: {}]
  %s4 = sld [smem:[#allocation0]]
  $region38: #{tpu_custom_call.1} parent=0
    _
  %s6 = ssub.s32 1, %s4
  %s7 = scalar_select 0, %s6, %s4
  $region1: #{tpu_custom_call.1} parent=0
    #allocation2 [shape = 'u8[4096]{0}', space=vmem, size = 0x1000, scoped, tag = 'input window, operand 0, single buffered']
    #allocation3 [shape = 's32[1]{0}', space=sflag, size = 0x4, scoped, tag = 'scoped memory for tpu_custom_call.1']
    #allocation4 [shape = 's32[1]{0}', space=sflag, size = 0x4, scoped, tag = 'scoped memory for tpu_custom_call.1']
    #allocation5 [shape = 'u8[32768]{0}', space=vmem, size = 0x8000, scoped, tag = 'input window, operand 1, single buffered']
    #allocation6 [shape = 's32[1]{0}', space=sflag, size = 0x4, scoped, tag = 'scoped memory for tpu_custom_call.1']
    #allocation7 [shape = 'u8[8192]{0}', space=vmem, size = 0x2000, scoped, tag = 'output window, operand 0, single buffered']
    %8 = vsyncpa [#allocation3], 0
    %9 = vsyncpa [#allocation6], 0
    %10 = vsyncpa [#allocation4], 0
    // Predicated region
    $region2: #{tpu_custom_call.1} parent=1 // pred_check
      _
    $region3: #{tpu_custom_call.1} parent=1 // pred_check_branch
      %12 = sbr.rel (0) target = $region5
    $region4: #{tpu_custom_call.1} parent=1 // pred_region
      %s14 = ssub.s32 128, 128
      %15 = vsyncadd [#allocation3], %s14
      %s16 = sshll.u32 [#allocation2], 4
      %s17 = int_to_ptr.vmem [resolvable:$true] %s16
      %22 = dma.hbm_to_vmem [thread:$0]  %s0, 128, %s17, [#allocation3], 64, 64, 4
    $region5: #{tpu_custom_call.1} parent=1 // pred_fallthru
      _
    // Predicated region
    $region6: #{tpu_custom_call.1} parent=1 // pred_check
      _
    $region7: #{tpu_custom_call.1} parent=1 // pred_check_branch
      %24 = sbr.rel (0) target = $region9
    $region8: #{tpu_custom_call.1} parent=1 // pred_region
      %s26 = ssub.s32 1024, 1024
      %27 = vsyncadd [#allocation6], %s26
      %s28 = sshll.u32 [#allocation5], 4
      %s29 = int_to_ptr.vmem [resolvable:$true] %s28
      %34 = dma.hbm_to_vmem [thread:$0]  %s1, 1024, %s29, [#allocation6], 64, 64, 4
    $region9: #{tpu_custom_call.1} parent=1 // pred_fallthru
      _
    // Predicated region
    $region10: #{tpu_custom_call.1} parent=1 // pred_check
      _
    $region11: #{tpu_custom_call.1} parent=1 // pred_check_branch
      %36 = sbr.rel (0) target = $region13
    $region12: #{tpu_custom_call.1} parent=1 // pred_region
      _
    $region13: #{tpu_custom_call.1} parent=1 // pred_fallthru
      _
    // Predicated region
    $region14: #{tpu_custom_call.1} parent=1 // pred_check
      _
    $region15: #{tpu_custom_call.1} parent=1 // pred_check_branch
      %38 = sbr.rel (0) target = $region17
    $region16: #{tpu_custom_call.1} parent=1 // pred_region
      %39 = dma.done [#allocation3], 128
    $region17: #{tpu_custom_call.1} parent=1 // pred_fallthru
      _
    // Predicated region
    $region18: #{tpu_custom_call.1} parent=1 // pred_check
      _
    $region19: #{tpu_custom_call.1} parent=1 // pred_check_branch
      %41 = sbr.rel (0) target = $region21
    $region20: #{tpu_custom_call.1} parent=1 // pred_region
      %42 = dma.done [#allocation6], 1024
    $region21: #{tpu_custom_call.1} parent=1 // pred_fallthru
      _
    %p44 = scmp.eq.s32.totalorder 0, 0
    // Predicated region
    $region22: #{tpu_custom_call.1} parent=1 // pred_check
      %p45 = pneg %p44
    $region23: #{tpu_custom_call.1} parent=1 // pred_check_branch
      %47 = sbr.rel (%p45) target = $region25
    $region24: #{tpu_custom_call.1} parent=1 // pred_region
      %48 = vst [vmem:[#allocation7] sm:$0xff] 0.0
      %49 = vst [vmem:[#allocation7 + $0x8] sm:$0xff] 0.0
    $region25: #{tpu_custom_call.1} parent=1 // pred_fallthru
      _
    %v50 = vld [vmem:[#allocation7] sm:$0xff]
    %v51 = vld [vmem:[#allocation7 + $0x8] sm:$0xff]
    %v52 = vld [vmem:[#allocation2] sm:$0xf]
    %v53 = vld [vmem:[#allocation2 + $0x4] sm:$0xf]
    %v54 = vld [vmem:[#allocation5] sm:$0xf]
    %v55 = vld [vmem:[#allocation5 + $0x4] sm:$0xf]
    %v56 = vld [vmem:[#allocation5 + $0x8] sm:$0xf]
    %v57 = vld [vmem:[#allocation5 + $0xc] sm:$0xf]
    %v58 = vld [vmem:[#allocation5 + $0x10] sm:$0xf]
    %v59 = vld [vmem:[#allocation5 + $0x14] sm:$0xf]
    %v60 = vld [vmem:[#allocation5 + $0x18] sm:$0xf]
    %v61 = vld [vmem:[#allocation5 + $0x1c] sm:$0xf]
    %v62 = vld [vmem:[#allocation5 + $0x20] sm:$0xf]
    %v63 = vld [vmem:[#allocation5 + $0x24] sm:$0xf]
    %v64 = vld [vmem:[#allocation5 + $0x28] sm:$0xf]
    %v65 = vld [vmem:[#allocation5 + $0x2c] sm:$0xf]
    %v66 = vld [vmem:[#allocation5 + $0x30] sm:$0xf]
    %v67 = vld [vmem:[#allocation5 + $0x34] sm:$0xf]
    %v68 = vld [vmem:[#allocation5 + $0x38] sm:$0xf]
    %v69 = vld [vmem:[#allocation5 + $0x3c] sm:$0xf]
    %v72 = vunpack.c.l.b16 %v52
    %v73 = vunpack.c.l.b16 %v53
    %v74 = vpack.c.b16 %v73, %v72
    %v92 = vunpack.c.l.b16 %v54
    %v93 = vunpack.c.l.b16 %v55
    %v94 = vunpack.c.l.b16 %v56
    %v95 = vunpack.c.l.b16 %v57
    %v96 = vunpack.c.l.b16 %v58
    %v97 = vunpack.c.l.b16 %v59
    %v98 = vunpack.c.l.b16 %v60
    %v99 = vunpack.c.l.b16 %v61
    %v100 = vunpack.c.l.b16 %v62
    %v101 = vunpack.c.l.b16 %v63
    %v102 = vunpack.c.l.b16 %v64
    %v103 = vunpack.c.l.b16 %v65
    %v104 = vunpack.c.l.b16 %v66
    %v105 = vunpack.c.l.b16 %v67
    %v106 = vunpack.c.l.b16 %v68
    %v107 = vunpack.c.l.b16 %v69
    %v108 = vpack.c.b16 %v93, %v92
    %v109 = vpack.c.b16 %v95, %v94
    %v110 = vpack.c.b16 %v97, %v96
    %v111 = vpack.c.b16 %v99, %v98
    %v112 = vpack.c.b16 %v101, %v100
    %v113 = vpack.c.b16 %v103, %v102
    %v114 = vpack.c.b16 %v105, %v104
    %v115 = vpack.c.b16 %v107, %v106
    %124 = vmatprep.subr.bf16.mxu0 0
    %125 = vmatpush1.bf16.msra.mxu0 %v115
    %126 = vmatprep.subr.bf16.mxu0 0
    %127 = vmatpush1.bf16.msra.mxu0 %v114
    %128 = vmatprep.subr.bf16.mxu0 0
    %129 = vmatpush1.bf16.msra.mxu0 %v113
    %130 = vmatprep.subr.bf16.mxu0 0
    %131 = vmatpush1.bf16.msra.mxu0 %v112
    %132 = vmatprep.subr.bf16.mxu0 0
    %133 = vmatpush1.bf16.msra.mxu0 %v111
    %134 = vmatprep.subr.bf16.mxu0 0
    %135 = vmatpush1.bf16.msra.mxu0 %v110
    %136 = vmatprep.subr.bf16.mxu0 0
    %137 = vmatpush1.bf16.msra.mxu0 %v109
    %138 = vmatprep.subr.bf16.mxu0 0
    %139 = vmatpush1.bf16.msra.mxu0 %v108
    %140 = vmatprep.subr.bf16.mxu0 0
    %141 = vmatpush2.bf16.msra.mxu0 0
    %142 = vmatprep.subr.bf16.mxu0 0
    %143 = vmatpush2.bf16.msra.mxu0 0
    %144 = vmatprep.subr.bf16.mxu0 0
    %145 = vmatpush2.bf16.msra.mxu0 0
    %146 = vmatprep.subr.bf16.mxu0 0
    %147 = vmatpush2.bf16.msra.mxu0 0
    %148 = vmatprep.subr.bf16.mxu0 0
    %149 = vmatpush2.bf16.msra.mxu0 0
    %150 = vmatprep.subr.bf16.mxu0 0
    %151 = vmatpush2.bf16.msra.mxu0 0
    %152 = vmatprep.subr.bf16.mxu0 0
    %153 = vmatpush2.bf16.msra.mxu0 0
    %154 = vmatprep.subr.bf16.mxu0 0
    %155 = vmatpush2.bf16.msra.mxu0 0
    %156 = vmatprep.mubr.bf16.mxu0 0
    %157 = vmatmul.mubr.bf16.gmra.mxu0 %v74
    %v158 = vpop.f32.mrf.mxu0
    %v159 = vadd.f32 0.0, %v158
    %v160 = vpop.f32.mrf.mxu0
    %v161 = vpop.f32.mrf.mxu0
    %v162 = vadd.f32 0.0, %v161
    %v163 = vpop.f32.mrf.mxu0
    %164 = vdwg.mxu0
    %v165 = vadd.f32 %v50, %v159
    %v166 = vadd.f32 %v51, %v162
    %167 = vst [vmem:[#allocation7] sm:$0xff] %v165
    %168 = vst [vmem:[#allocation7 + $0x8] sm:$0xff] %v166
    // Predicated region
    $region26: #{tpu_custom_call.1} parent=1 // pred_check
      %p169 = pneg %p44
    $region27: #{tpu_custom_call.1} parent=1 // pred_check_branch
      %171 = sbr.rel (%p169) target = $region29
    $region28: #{tpu_custom_call.1} parent=1 // pred_region
      %v172 = vld [vmem:[#allocation7] sm:$0xff]
      %v173 = vld [vmem:[#allocation7 + $0x8] sm:$0xff]
      %v174 = vld [vmem:[%s2] sm:$0x1]
      %v176 = vlaneseq
      %v177 = vshrl.u32 %v176, 7
      %v178 = vsub.s32 0, %v177
      %v179 = vrot.slane %v174, %v178
      %v181 = vadd.f32 %v172, %v179
      %v182 = vadd.f32 %v173, %v179
      %183 = vst [vmem:[#allocation7] sm:$0xff] %v181
      %184 = vst [vmem:[#allocation7 + $0x8] sm:$0xff] %v182
    $region29: #{tpu_custom_call.1} parent=1 // pred_fallthru
      _
    // Predicated region
    $region30: #{tpu_custom_call.1} parent=1 // pred_check
      _
    $region31: #{tpu_custom_call.1} parent=1 // pred_check_branch
      %186 = sbr.rel (0) target = $region33
    $region32: #{tpu_custom_call.1} parent=1 // pred_region
      %s188 = ssub.s32 256, 256
      %189 = vsyncadd [#allocation4], %s188
      %s190 = sshll.u32 [#allocation7], 4
      %s191 = int_to_ptr.vmem [resolvable:$true] %s190
      %196 = dma.vmem_to_hbm [thread:$0]  %s191, 256, %s3, [#allocation4], 128, 128, 8
    $region33: #{tpu_custom_call.1} parent=1 // pred_fallthru
      _
    // Predicated region
    $region34: #{tpu_custom_call.1} parent=1 // pred_check
      _
    $region35: #{tpu_custom_call.1} parent=1 // pred_check_branch
      %198 = sbr.rel (0) target = $region37
    $region36: #{tpu_custom_call.1} parent=1 // pred_region
      %199 = dma.done [#allocation4], 256
    $region37: #{tpu_custom_call.1} parent=1 // pred_fallthru
      _
    %200 = vsyncpa [#allocation3], 1
    %201 = vsyncpa [#allocation6], 1
    %202 = vsyncpa [#allocation4], 1

</llo_original>
